<compile_context>
chip_gen: v6e
topology: v6e:2x2x1
jax: 0.10.0
libtpu: 0.0.40
codegen_flags: <defaults>
</compile_context>

<pallas_src>
import functools
import math

import jax
import jax.numpy as jnp
from jax.experimental import pallas as pl
from jax.experimental.pallas import tpu as pltpu


# Production: set to jnp.bfloat16 for native MXU rate and half the weight-DMA bytes
# (accumulation stays f32; softmax / LayerNorm math stays f32 either way).
MATMUL_DTYPE = jnp.float32


def _vmem_limit(block_bytes, lo=32 << 20, hi=64 << 20):
    """Scoped-VMEM request sized from the actual block footprint, with headroom.

    Floor >= every generation's default scoped limit; ceiling <= v7x's 64 MiB per-TC
    physical VMEM so the request is always honorable.
    """
    return int(min(hi, max(lo, 2 * block_bytes + (8 << 20))))


# ----------------------------------------------------------------------------
# Kernel 1: Embedding over flat rows (R = B*S), tiled on the row axis.
#   out = CVE_time(time) + CVE_value(value) + var_emb
#   CVE(x) = tanh(x * W1 + b1) @ W2 + b2     (W1 is a (1, 2d) row -> outer product)
# The variable-embedding gather is done by XLA in the wrapper (no one-hot matmul).
# ----------------------------------------------------------------------------
def embedding_kernel(t_ref, v_ref, varemb_ref,
                     wt1_ref, bt1_ref, wt2_ref, bt2_ref,
                     wv1_ref, bv1_ref, wv2_ref, bv2_ref,
                     out_ref):
    t = t_ref[...]                                      # (tile, 1) f32
    v = v_ref[...]                                      # (tile, 1) f32

    th = jnp.tanh(t * wt1_ref[...] + bt1_ref[...])      # (tile, 2d)  VPU (f32 math)
    te = jnp.dot(th.astype(wt2_ref.dtype), wt2_ref[...],
                 preferred_element_type=jnp.float32) + bt2_ref[...]

    vh = jnp.tanh(v * wv1_ref[...] + bv1_ref[...])
    ve = jnp.dot(vh.astype(wv2_ref.dtype), wv2_ref[...],
                 preferred_element_type=jnp.float32) + bv2_ref[...]

    out_ref[...] = (te + ve + varemb_ref[...]).astype(out_ref.dtype)


# ----------------------------------------------------------------------------
# Kernel 2: the full stack of N EncoderBlocks, fused into one pallas_call.
# grid = (batch "parallel", block "arbitrary").  One block's weights at a time are
# streamed into VMEM (double-buffered over the inner axis); activations are carried
# across blocks in a VMEM scratch (x_acc); the additive attention-mask bias is built
# once per batch element (bias_acc); output is written back on the last block only.
# ----------------------------------------------------------------------------
def encoder_stack_kernel(x_ref, mask_ref,
                         wq_ref, bq_ref, wk_ref, bk_ref, wv_ref, bv_ref,
                         wo_ref, bo_ref, g_ref, beta_ref,
                         w1_ref, b1_ref, w2_ref, b2_ref,
                         out_ref, x_acc, bias_acc, *, n_heads):
    n = pl.program_id(1)                 # encoder-block index (inner, "arbitrary")

    @pl.when(n == 0)
    def _():
        # Load embedded activations and build the additive mask bias ONCE per batch
        # element (hoisted out of the per-block loop).
        x_acc[...] = x_ref[0].astype(jnp.float32)
        bias_acc[...] = jnp.where(mask_ref[0].astype(jnp.float32) == 0.0, -1e30, 0.0)

    x = x_acc[...]                       # (S, d) f32, carried across blocks
    S, d = x.shape
    dh = d // n_heads
    scale = dh ** -0.5

    wq = wq_ref[0]; wk = wk_ref[0]; wv = wv_ref[0]             # (d, d) streamed block
    wo = wo_ref[0]                                             # (H, dh, d)
    w1 = w1_ref[0]; w2 = w2_ref[0]                             # (d, d_ff), (d_ff, d)
    g = g_ref[0]; beta = beta_ref[0]                           # (1, d)

    xm = x.astype(wq.dtype)
    q = jnp.dot(xm, wq, preferred_element_type=jnp.float32) + bq_ref[0]   # (S, d)
    k = jnp.dot(xm, wk, preferred_element_type=jnp.float32) + bk_ref[0]
    v = jnp.dot(xm, wv, preferred_element_type=jnp.float32) + bv_ref[0]

    # Head-batched attention: (H, S, dh) tensors, single batched dot_generals.
    # TODO(synk): with dh a multiple of 128 (production) replace the lane-offset
    # slices with a plain reshape; add flash-style q tiling before large S.
    qh = jnp.stack([q[:, h * dh:(h + 1) * dh] for h in range(n_heads)], axis=0)
    kh = jnp.stack([k[:, h * dh:(h + 1) * dh] for h in range(n_heads)], axis=0)
    vh = jnp.stack([v[:, h * dh:(h + 1) * dh] for h in range(n_heads)], axis=0)

    s = jnp.einsum('hqd,hkd->hqk', qh.astype(wq.dtype), kh.astype(wq.dtype),
                   preferred_element_type=jnp.float32) * scale            # (H, S, S) f32
    s = s + bias_acc[...][None, :, :]                    # masked_fill(mask==0, -inf)
    s = s - jnp.max(s, axis=-1, keepdims=True)
    e = jnp.exp(s)
    p = e / jnp.sum(e, axis=-1, keepdims=True)           # exact softmax (review note)

    ctx = jnp.einsum('hqk,hkd->hqd', p.astype(wq.dtype), vh.astype(wq.dtype),
                     preferred_element_type=jnp.float32)                  # (H, S, dh)

    # Output projection with Wo pre-split per head; equivalent to concat(heads) @ Wo.
    # TODO(synk): fold the head-sum into one d_model-wide MXU contraction at
    # production shapes (requires an aligned (S, d) relayout of ctx).
    attn = jnp.einsum('hqd,hdm->hqm', ctx.astype(wo.dtype), wo,
                      preferred_element_type=jnp.float32).sum(axis=0) + bo_ref[0]

    def layer_norm(z):                   # the module only ever uses ln2 — shared here
        mu = jnp.mean(z, axis=-1, keepdims=True)
        var = jnp.mean((z - mu) ** 2, axis=-1, keepdims=True)
        return (z - mu) * jax.lax.rsqrt(var + 1e-5) * g + beta

    out1 = x + layer_norm(attn)
    h1 = jnp.maximum(jnp.dot(out1.astype(w1.dtype), w1,
                             preferred_element_type=jnp.float32) + b1_ref[0], 0.0)
    ffn = jnp.dot(h1.astype(w2.dtype), w2,
                  preferred_element_type=jnp.float32) + b2_ref[0]
    new_x = out1 + layer_norm(ffn)

    x_acc[...] = new_x                   # carried activation for the next block

    @pl.when(n == pl.num_programs(1) - 1)
    def _():
        out_ref[0] = new_x.astype(out_ref.dtype)


# ----------------------------------------------------------------------------
# Wrappers
# ----------------------------------------------------------------------------
def _row_tile(n_rows):
    # >=512-row tiles reach ~85% of HBM roofline for mem-bound kernels; allow up to
    # 2048 when the row count permits.
    for t in (2048, 1024, 512, 256, 128, 64, 32, 16, 8):
        if n_rows % t == 0:
            return t
    return n_rows        # full extent is always a legal block


def run_embedding(params, time, value, var_emb, matmul_dtype=MATMUL_DTYPE):
    B, S = time.shape
    d_model = params['cvs_time']['W2'].shape[1]
    R = B * S
    tile = _row_tile(R)
    pt, pv = params['cvs_time'], params['cvs_value']
    args = (time.reshape(R, 1), value.reshape(R, 1), var_emb.reshape(R, d_model),
            pt['W1'], pt['b1'], pt['W2'].astype(matmul_dtype), pt['b2'],
            pv['W1'], pv['b1'], pv['W2'].astype(matmul_dtype), pv['b2'])

    def row_spec(cols):
        return pl.BlockSpec((tile, cols), lambda i: (i, 0))

    def resident_spec(shape):
        nd = len(shape)
        return pl.BlockSpec(tuple(shape), lambda i, _nd=nd: (0,) * _nd)

    # double-buffered row tiles + resident CVE weights (+ headroom inside _vmem_limit)
    block_bytes = (tile * (2 + 2 * d_model) * 4 * 2
                   + sum(int(math.prod(a.shape)) * a.dtype.itemsize for a in args[3:]))

    out = pl.pallas_call(
        embedding_kernel,
        # handoff activation in MATMUL_DTYPE (bf16 halves the HBM round trip in prod)
        out_shape=jax.ShapeDtypeStruct((R, d_model), matmul_dtype),
        grid=(R // tile,),
        in_specs=[row_spec(1), row_spec(1), row_spec(d_model)]
                 + [resident_spec(a.shape) for a in args[3:]],
        out_specs=row_spec(d_model),
        compiler_params=pltpu.CompilerParams(
            dimension_semantics=("parallel",),
            vmem_limit_bytes=_vmem_limit(block_bytes)),
    )(*args)
    return out.reshape(B, S, d_model)


def stack_block_params(blocks, n_heads, matmul_dtype=MATMUL_DTYPE):
    d_model = blocks[0]['Wq'].shape[0]
    dh = d_model // n_heads
    N = len(blocks)

    def st(name):
        return jnp.stack([blk[name] for blk in blocks], axis=0)

    return {
        'Wq': st('Wq').astype(matmul_dtype), 'bq': st('bq'),
        'Wk': st('Wk').astype(matmul_dtype), 'bk': st('bk'),
        'Wv': st('Wv').astype(matmul_dtype), 'bv': st('bv'),
        # Wo pre-split per head: rows h*dh:(h+1)*dh of Wo act on head h's output.
        'Wo': st('Wo').reshape(N, n_heads, dh, d_model).astype(matmul_dtype),
        'bo': st('bo'),
        'g': st('ln_g'), 'beta': st('ln_b'),
        'W1': st('W1').astype(matmul_dtype), 'b1': st('b1'),
        'W2': st('W2').astype(matmul_dtype), 'b2': st('b2'),
    }


def run_encoder_stack(stacked, x, mask_i8, n_heads):
    B, S, d_model = x.shape
    d_ff = stacked['W1'].shape[2]
    weights = (stacked['Wq'], stacked['bq'], stacked['Wk'], stacked['bk'],
               stacked['Wv'], stacked['bv'], stacked['Wo'], stacked['bo'],
               stacked['g'], stacked['beta'],
               stacked['W1'], stacked['b1'], stacked['W2'], stacked['b2'])
    N = stacked['Wq'].shape[0]

    def batch_spec(shape):
        nd = len(shape)
        return pl.BlockSpec((1,) + tuple(shape[1:]),
                            lambda b, n, _nd=nd: (b,) + (0,) * (_nd - 1))

    def stream_spec(shape):
        # One encoder block's weights at a time, indexed by the inner grid axis `n`.
        # The pipeline double-buffers them, so weight VMEM is ~2x one block and the
        # next block's weight DMA overlaps this block's compute.
        nd = len(shape)
        return pl.BlockSpec((1,) + tuple(shape[1:]),
                            lambda b, n, _nd=nd: (n,) + (0,) * (_nd - 1))

    kernel = functools.partial(encoder_stack_kernel, n_heads=n_heads)

    # --- VMEM budget (per-block footprint, double-buffered, + transients) ---
    weight_block_bytes = sum(int(math.prod(w.shape[1:])) * w.dtype.itemsize
                             for w in weights)
    io_block_bytes = (S * d_model * x.dtype.itemsize        # x tile
                      + S * S * mask_i8.dtype.itemsize      # mask tile (int8)
                      + S * d_model * 4)                     # output tile
    scratch_bytes = S * d_model * 4 + S * S * 4              # x_acc + bias_acc
    transient_bytes = (3 * n_heads * S * S * 4               # scores / exp / probs
                       + S * d_ff * 4 + 6 * S * d_model * 4)
    block_bytes = (2 * (weight_block_bytes + io_block_bytes)
                   + scratch_bytes + transient_bytes)

    # --- cost hint so XLA can overlap surrounding ops with this long fused call ---
    flops = 2 * B * N * (4 * S * d_model * d_model
                         + 2 * S * S * d_model
                         + 2 * S * d_model * d_ff)
    transcendentals = B * N * (n_heads * S * S + 2 * S)
    bytes_accessed = (B * N * weight_block_bytes                       # weights re-streamed per b
                      + B * S * d_model * (x.dtype.itemsize + 4)       # x in + out
                      + B * S * S * mask_i8.dtype.itemsize)            # mask

    return pl.pallas_call(
        kernel,
        out_shape=jax.ShapeDtypeStruct((B, S, d_model), jnp.float32),
        grid=(B, N),                       # batch outer ("parallel"), blocks inner
        in_specs=[batch_spec(x.shape), batch_spec(mask_i8.shape)]
                 + [stream_spec(w.shape) for w in weights],
        out_specs=batch_spec((B, S, d_model)),
        scratch_shapes=[pltpu.VMEM((S, d_model), jnp.float32),   # carried activations
                        pltpu.VMEM((S, S), jnp.float32)],        # additive mask bias
        compiler_params=pltpu.CompilerParams(
            dimension_semantics=("parallel", "arbitrary"),
            vmem_limit_bytes=_vmem_limit(block_bytes)),
        cost_estimate=pl.CostEstimate(flops=flops,
                                      transcendentals=transcendentals,
                                      bytes_accessed=bytes_accessed),
    )(x, mask_i8, *weights)


def encoder_forward(params, time, variable, value, mask, n_heads):
    # Variable embedding: plain gather in XLA (no O(B*S*V) one-hot f32 tensor).
    var_emb = jnp.take(params['var_table'], variable, axis=0)
    x = run_embedding(params, time, value, var_emb)
    stacked = stack_block_params(params['blocks'], n_heads)
    mask_i8 = (mask != 0).astype(jnp.int8)       # O(S^2) input shipped at 1 B/elem
    return run_encoder_stack(stacked, x, mask_i8, n_heads)


# ----------------------------------------------------------------------------
# Deterministic parameter init (synthetic; shapes follow the nn.Module __init__)
# sinusoidal=False branch: cvs_time is a ContinuousValueEmbedding (the __init__
# always overwrites the SineActivation unless sinusoidal == 'both').
# ----------------------------------------------------------------------------
def init_params(key, d_model, n_heads, d_ff, num_variables, N):
    keys = iter(jax.random.split(key, 64))
    s = 0.1

    def nrm(shape):
        return s * jax.random.normal(next(keys), shape, jnp.float32)

    def cve():
        return {'W1': nrm((1, 2 * d_model)), 'b1': nrm((1, 2 * d_model)),
                'W2': nrm((2 * d_model, d_model)), 'b2': nrm((1, d_model))}

    params = {
        'cvs_time': cve(),
        'cvs_value': cve(),
        'var_table': nrm((num_variables + 1, d_model)),
        'blocks': [],
    }
    for _ in range(N):
        params['blocks'].append({
            'Wq': nrm((d_model, d_model)), 'bq': nrm((1, d_model)),
            'Wk': nrm((d_model, d_model)), 'bk': nrm((1, d_model)),
            'Wv': nrm((d_model, d_model)), 'bv': nrm((1, d_model)),
            'Wo': nrm((d_model, d_model)), 'bo': nrm((1, d_model)),
            'ln_g': jnp.ones((1, d_model), jnp.float32),
            'ln_b': jnp.zeros((1, d_model), jnp.float32),
            'W1': nrm((d_model, d_ff)), 'b1': nrm((1, d_ff)),
            'W2': nrm((d_ff, d_model)), 'b2': nrm((1, d_model)),
        })
    return params


# ----------------------------------------------------------------------------
# Pure-JAX reference (mirrors the PyTorch forward in eval mode)
# ----------------------------------------------------------------------------
def reference_forward(params, time, variable, value, mask, n_heads):
    def cve(p, x):
        h = jnp.tanh(x[..., None] * p['W1'][0] + p['b1'][0])
        return h @ p['W2'] + p['b2'][0]

    x = (cve(params['cvs_time'], time) + cve(params['cvs_value'], value)
         + params['var_table'][variable])
    B, S, d = x.shape
    dh = d // n_heads
    for blk in params['blocks']:
        def ln(z):
            mu = z.mean(-1, keepdims=True)
            var = ((z - mu) ** 2).mean(-1, keepdims=True)
            return (z - mu) / jnp.sqrt(var + 1e-5) * blk['ln_g'][0] + blk['ln_b'][0]

        q = x @ blk['Wq'] + blk['bq'][0]
        k = x @ blk['Wk'] + blk['bk'][0]
        v = x @ blk['Wv'] + blk['bv'][0]
        qh = q.reshape(B, S, n_heads, dh).transpose(0, 2, 1, 3)
        kh = k.reshape(B, S, n_heads, dh).transpose(0, 2, 1, 3)
        vh = v.reshape(B, S, n_heads, dh).transpose(0, 2, 1, 3)
        w = jnp.einsum('bhqd,bhkd->bhqk', qh, kh) * dh ** -0.5
        w = jnp.where(mask[:, None, :, :] == 0, -1e30, w)
        w = jax.nn.softmax(w, axis=-1)
        o = jnp.einsum('bhqk,bhkd->bhqd', w, vh).transpose(0, 2, 1, 3).reshape(B, S, d)
        attn = o @ blk['Wo'] + blk['bo'][0]
        out1 = x + ln(attn)
        ffn = jnp.maximum(out1 @ blk['W1'] + blk['b1'][0], 0.0) @ blk['W2'] + blk['b2'][0]
        x = out1 + ln(ffn)
    return x


# ----------------------------------------------------------------------------
if __name__ == "__main__":
    d_model, n_heads, d_ff = 32, 4, 64
    num_variables, N = 5, 2
    B, S = 2, 8

    key = jax.random.PRNGKey(0)
    k_par, k_t, k_v, k_var = jax.random.split(key, 4)

    params = init_params(k_par, d_model, n_heads, d_ff, num_variables, N)

    time = jax.random.normal(k_t, (B, S), jnp.float32)
    value = jax.random.normal(k_v, (B, S), jnp.float32)
    variable = jax.random.randint(k_var, (B, S), 0, num_variables + 1).astype(jnp.int32)
    mask = jnp.tile(jnp.tril(jnp.ones((S, S), jnp.float32))[None], (B, 1, 1))

    out = encoder_forward(params, time, variable, value, mask, n_heads)
    out = jax.block_until_ready(out)

    ref = reference_forward(params, time, variable, value, mask, n_heads)
    assert out.shape == (B, S, d_model)
    # f32 end-to-end with exact softmax division; tolerance covers the reference's own
    # default-precision TPU matmuls.  With MATMUL_DTYPE=bf16, loosen slightly.
    assert jnp.allclose(out, ref, rtol=2e-2, atol=2e-2), "mismatch vs pure-JAX reference"

    print("KERNEL_OK")
</pallas_src>

<mosaic_0001>
module attributes {stable_mosaic.version = 11 : i64} {
  func.func @embedding_kernel(%arg0: i32, %arg1: memref<16x1xf32, #tpu.memory_space<vmem>>, %arg2: memref<16x1xf32, #tpu.memory_space<vmem>>, %arg3: memref<16x32xf32, #tpu.memory_space<vmem>>, %arg4: memref<1x64xf32, #tpu.memory_space<vmem>>, %arg5: memref<1x64xf32, #tpu.memory_space<vmem>>, %arg6: memref<64x32xf32, #tpu.memory_space<vmem>>, %arg7: memref<1x32xf32, #tpu.memory_space<vmem>>, %arg8: memref<1x64xf32, #tpu.memory_space<vmem>>, %arg9: memref<1x64xf32, #tpu.memory_space<vmem>>, %arg10: memref<64x32xf32, #tpu.memory_space<vmem>>, %arg11: memref<1x32xf32, #tpu.memory_space<vmem>>, %arg12: memref<16x32xf32, #tpu.memory_space<vmem>>) attributes {dimension_semantics = [#tpu.dimension_semantics<parallel>], iteration_bounds = array<i64: 1>, scalar_prefetch = 0 : i64, scratch_operands = 0 : i64, tpu.core_type = #tpu.core_type<tc>, window_params = [{transform_indices = @transform_0, window_bounds = array<i64: 16, 1>}, {transform_indices = @transform_1, window_bounds = array<i64: 16, 1>}, {transform_indices = @transform_2, window_bounds = array<i64: 16, 32>}, {pipeline_mode = #tpu.pipeline_mode<synchronous>, transform_indices = @transform_3, window_bounds = array<i64: 1, 64>}, {pipeline_mode = #tpu.pipeline_mode<synchronous>, transform_indices = @transform_4, window_bounds = array<i64: 1, 64>}, {pipeline_mode = #tpu.pipeline_mode<synchronous>, transform_indices = @transform_5, window_bounds = array<i64: 64, 32>}, {pipeline_mode = #tpu.pipeline_mode<synchronous>, transform_indices = @transform_6, window_bounds = array<i64: 1, 32>}, {pipeline_mode = #tpu.pipeline_mode<synchronous>, transform_indices = @transform_7, window_bounds = array<i64: 1, 64>}, {pipeline_mode = #tpu.pipeline_mode<synchronous>, transform_indices = @transform_8, window_bounds = array<i64: 1, 64>}, {pipeline_mode = #tpu.pipeline_mode<synchronous>, transform_indices = @transform_9, window_bounds = array<i64: 64, 32>}, {pipeline_mode = #tpu.pipeline_mode<synchronous>, transform_indices = @transform_10, window_bounds = array<i64: 1, 32>}, {transform_indices = @transform_11, window_bounds = array<i64: 16, 32>}]} {
    %c0 = arith.constant 0 : index
    %c0_0 = arith.constant 0 : index
    %0 = vector.load %arg1[%c0, %c0_0] : memref<16x1xf32, #tpu.memory_space<vmem>>, vector<16x1xf32>
    %c0_1 = arith.constant 0 : index
    %c0_2 = arith.constant 0 : index
    %1 = vector.load %arg2[%c0_1, %c0_2] : memref<16x1xf32, #tpu.memory_space<vmem>>, vector<16x1xf32>
    %c0_3 = arith.constant 0 : index
    %c0_4 = arith.constant 0 : index
    %2 = vector.load %arg4[%c0_3, %c0_4] : memref<1x64xf32, #tpu.memory_space<vmem>>, vector<1x64xf32>
    %3 = vector.broadcast %0 : vector<16x1xf32> to vector<16x64xf32>
    %4 = vector.broadcast %2 : vector<1x64xf32> to vector<16x64xf32>
    %5 = arith.mulf %3, %4 : vector<16x64xf32>
    %c0_5 = arith.constant 0 : index
    %c0_6 = arith.constant 0 : index
    %6 = vector.load %arg5[%c0_5, %c0_6] : memref<1x64xf32, #tpu.memory_space<vmem>>, vector<1x64xf32>
    %7 = vector.broadcast %6 : vector<1x64xf32> to vector<16x64xf32>
    %8 = arith.addf %5, %7 : vector<16x64xf32>
    %9 = math.tanh %8 : vector<16x64xf32>
    %c0_7 = arith.constant 0 : index
    %c0_8 = arith.constant 0 : index
    %10 = vector.load %arg6[%c0_7, %c0_8] : memref<64x32xf32, #tpu.memory_space<vmem>>, vector<64x32xf32>
    %cst = arith.constant dense<0.000000e+00> : vector<16x32xf32>
    %11 = tpu.matmul %9, %10, %cst {dimension_numbers = #tpu.dot_dimension_numbers<[1], [0], [0], [1], [0, 0, 1, 1], [], []>} : vector<16x64xf32>, vector<64x32xf32>, vector<16x32xf32> -> vector<16x32xf32>
    %c0_9 = arith.constant 0 : index
    %c0_10 = arith.constant 0 : index
    %12 = vector.load %arg7[%c0_9, %c0_10] : memref<1x32xf32, #tpu.memory_space<vmem>>, vector<1x32xf32>
    %13 = vector.broadcast %12 : vector<1x32xf32> to vector<16x32xf32>
    %14 = arith.addf %11, %13 : vector<16x32xf32>
    %c0_11 = arith.constant 0 : index
    %c0_12 = arith.constant 0 : index
    %15 = vector.load %arg8[%c0_11, %c0_12] : memref<1x64xf32, #tpu.memory_space<vmem>>, vector<1x64xf32>
    %16 = vector.broadcast %1 : vector<16x1xf32> to vector<16x64xf32>
    %17 = vector.broadcast %15 : vector<1x64xf32> to vector<16x64xf32>
    %18 = arith.mulf %16, %17 : vector<16x64xf32>
    %c0_13 = arith.constant 0 : index
    %c0_14 = arith.constant 0 : index
    %19 = vector.load %arg9[%c0_13, %c0_14] : memref<1x64xf32, #tpu.memory_space<vmem>>, vector<1x64xf32>
    %20 = vector.broadcast %19 : vector<1x64xf32> to vector<16x64xf32>
    %21 = arith.addf %18, %20 : vector<16x64xf32>
    %22 = math.tanh %21 : vector<16x64xf32>
    %c0_15 = arith.constant 0 : index
    %c0_16 = arith.constant 0 : index
    %23 = vector.load %arg10[%c0_15, %c0_16] : memref<64x32xf32, #tpu.memory_space<vmem>>, vector<64x32xf32>
    %cst_17 = arith.constant dense<0.000000e+00> : vector<16x32xf32>
    %24 = tpu.matmul %22, %23, %cst_17 {dimension_numbers = #tpu.dot_dimension_numbers<[1], [0], [0], [1], [0, 0, 1, 1], [], []>} : vector<16x64xf32>, vector<64x32xf32>, vector<16x32xf32> -> vector<16x32xf32>
    %c0_18 = arith.constant 0 : index
    %c0_19 = arith.constant 0 : index
    %25 = vector.load %arg11[%c0_18, %c0_19] : memref<1x32xf32, #tpu.memory_space<vmem>>, vector<1x32xf32>
    %26 = vector.broadcast %25 : vector<1x32xf32> to vector<16x32xf32>
    %27 = arith.addf %24, %26 : vector<16x32xf32>
    %28 = arith.addf %14, %27 : vector<16x32xf32>
    %c0_20 = arith.constant 0 : index
    %c0_21 = arith.constant 0 : index
    %29 = vector.load %arg3[%c0_20, %c0_21] : memref<16x32xf32, #tpu.memory_space<vmem>>, vector<16x32xf32>
    %30 = arith.addf %28, %29 : vector<16x32xf32>
    %c0_22 = arith.constant 0 : index
    %c0_23 = arith.constant 0 : index
    %31 = vector.load %arg12[%c0_22, %c0_23] : memref<16x32xf32, #tpu.memory_space<vmem>>, vector<16x32xf32>
    tpu.vector_store %arg12[%c0_22, %c0_23], %30 {strides = array<i32>} : memref<16x32xf32, #tpu.memory_space<vmem>>, vector<16x32xf32>,
    return
  }
  func.func @transform_0(%arg0: i32) -> (i32, i32) {
    %c0_i32 = arith.constant 0 : i32
    %c0_i32_0 = arith.constant 0 : i32
    return %arg0, %c0_i32 : i32, i32
  }
  func.func @transform_1(%arg0: i32) -> (i32, i32) {
    %c0_i32 = arith.constant 0 : i32
    %c0_i32_0 = arith.constant 0 : i32
    return %arg0, %c0_i32 : i32, i32
  }
  func.func @transform_2(%arg0: i32) -> (i32, i32) {
    %c0_i32 = arith.constant 0 : i32
    %c0_i32_0 = arith.constant 0 : i32
    return %arg0, %c0_i32 : i32, i32
  }
  func.func @transform_3(%arg0: i32) -> (i32, i32) {
    %c0_i32 = arith.constant 0 : i32
    %c0_i32_0 = arith.constant 0 : i32
    %c0_i32_1 = arith.constant 0 : i32
    return %c0_i32, %c0_i32_0 : i32, i32
  }
  func.func @transform_4(%arg0: i32) -> (i32, i32) {
    %c0_i32 = arith.constant 0 : i32
    %c0_i32_0 = arith.constant 0 : i32
    %c0_i32_1 = arith.constant 0 : i32
    return %c0_i32, %c0_i32_0 : i32, i32
  }
  func.func @transform_5(%arg0: i32) -> (i32, i32) {
    %c0_i32 = arith.constant 0 : i32
    %c0_i32_0 = arith.constant 0 : i32
    %c0_i32_1 = arith.constant 0 : i32
    return %c0_i32, %c0_i32_0 : i32, i32
  }
  func.func @transform_6(%arg0: i32) -> (i32, i32) {
    %c0_i32 = arith.constant 0 : i32
    %c0_i32_0 = arith.constant 0 : i32
    %c0_i32_1 = arith.constant 0 : i32
    return %c0_i32, %c0_i32_0 : i32, i32
  }
  func.func @transform_7(%arg0: i32) -> (i32, i32) {
    %c0_i32 = arith.constant 0 : i32
    %c0_i32_0 = arith.constant 0 : i32
    %c0_i32_1 = arith.constant 0 : i32
    return %c0_i32, %c0_i32_0 : i32, i32
  }
  func.func @transform_8(%arg0: i32) -> (i32, i32) {
    %c0_i32 = arith.constant 0 : i32
    %c0_i32_0 = arith.constant 0 : i32
    %c0_i32_1 = arith.constant 0 : i32
    return %c0_i32, %c0_i32_0 : i32, i32
  }
  func.func @transform_9(%arg0: i32) -> (i32, i32) {
    %c0_i32 = arith.constant 0 : i32
    %c0_i32_0 = arith.constant 0 : i32
    %c0_i32_1 = arith.constant 0 : i32
    return %c0_i32, %c0_i32_0 : i32, i32
  }
  func.func @transform_10(%arg0: i32) -> (i32, i32) {
    %c0_i32 = arith.constant 0 : i32
    %c0_i32_0 = arith.constant 0 : i32
    %c0_i32_1 = arith.constant 0 : i32
    return %c0_i32, %c0_i32_0 : i32, i32
  }
  func.func @transform_11(%arg0: i32) -> (i32, i32) {
    %c0_i32 = arith.constant 0 : i32
    %c0_i32_0 = arith.constant 0 : i32
    return %arg0, %c0_i32 : i32, i32
  }
}

</mosaic_0001>

<llo_original>
// kernel: tpu_custom_call.1
$region0: #{tpu_custom_call.1}
  #allocation0 [shape = 'u32[]', space=smem, size = 0x4, offset = 0x4, fixed_abs, tag = 'smem constant byte address 0x4 - core index']
  #allocation1 [shape = 'u32[144,128]{1,0:T(1,128)}', space=vmem, size = 0x12000, scoped, tag = 'internal scratch']
  %s0 = inlined_call_operand.vmem [shape: f32[16,1], index: 0, kind: input, shape index: {}]
  %s1 = inlined_call_operand.vmem [shape: f32[16,1], index: 1, kind: input, shape index: {}]
  %s2 = inlined_call_operand.vmem [shape: f32[16,32], index: 2, kind: input, shape index: {}]
  %s3 = inlined_call_operand.vmem [shape: f32[1,64], index: 3, kind: input, shape index: {}]
  %s4 = inlined_call_operand.vmem [shape: f32[1,64], index: 4, kind: input, shape index: {}]
  %s5 = inlined_call_operand.vmem [shape: f32[64,32], index: 5, kind: input, shape index: {}]
  %s6 = inlined_call_operand.vmem [shape: f32[1,32], index: 6, kind: input, shape index: {}]
  %s7 = inlined_call_operand.vmem [shape: f32[1,64], index: 7, kind: input, shape index: {}]
  %s8 = inlined_call_operand.vmem [shape: f32[1,64], index: 8, kind: input, shape index: {}]
  %s9 = inlined_call_operand.vmem [shape: f32[64,32], index: 9, kind: input, shape index: {}]
  %s10 = inlined_call_operand.vmem [shape: f32[1,32], index: 10, kind: input, shape index: {}]
  %s11 = inlined_call_operand.hbm [shape: f32[16,32], index: 11, kind: output, shape index: {}]
  %s12 = sld [smem:[#allocation0]]
  $region54: #{tpu_custom_call.1} parent=0
    _
  %s14 = ssub.s32 1, %s12
  %s15 = scalar_select 0, %s14, %s12
  $region1: #{tpu_custom_call.1} parent=0
    #allocation2 [shape = 'u8[8192]{0}', space=vmem, size = 0x2000, scoped, tag = 'output window, operand 0, single buffered']
    #allocation3 [shape = 's32[1]{0}', space=sflag, size = 0x4, scoped, tag = 'scoped memory for tpu_custom_call.1']
    %16 = vsyncpa [#allocation3], 0
    // Predicated region
    $region2: #{tpu_custom_call.1} parent=1 // pred_check
      _
    $region3: #{tpu_custom_call.1} parent=1 // pred_check_branch
      %18 = sbr.rel (0) target = $region5
    $region4: #{tpu_custom_call.1} parent=1 // pred_region
      _
    $region5: #{tpu_custom_call.1} parent=1 // pred_fallthru
      _
    // Predicated region
    $region6: #{tpu_custom_call.1} parent=1 // pred_check
      _
    $region7: #{tpu_custom_call.1} parent=1 // pred_check_branch
      %20 = sbr.rel (0) target = $region9
    $region8: #{tpu_custom_call.1} parent=1 // pred_region
      _
    $region9: #{tpu_custom_call.1} parent=1 // pred_fallthru
      _
    // Predicated region
    $region10: #{tpu_custom_call.1} parent=1 // pred_check
      _
    $region11: #{tpu_custom_call.1} parent=1 // pred_check_branch
      %22 = sbr.rel (0) target = $region13
    $region12: #{tpu_custom_call.1} parent=1 // pred_region
      _
    $region13: #{tpu_custom_call.1} parent=1 // pred_fallthru
      _
    // Predicated region
    $region14: #{tpu_custom_call.1} parent=1 // pred_check
      _
    $region15: #{tpu_custom_call.1} parent=1 // pred_check_branch
      %24 = sbr.rel (0) target = $region17
    $region16: #{tpu_custom_call.1} parent=1 // pred_region
      _
    $region17: #{tpu_custom_call.1} parent=1 // pred_fallthru
      _
    // Predicated region
    $region18: #{tpu_custom_call.1} parent=1 // pred_check
      _
    $region19: #{tpu_custom_call.1} parent=1 // pred_check_branch
      %26 = sbr.rel (0) target = $region21
    $region20: #{tpu_custom_call.1} parent=1 // pred_region
      _
    $region21: #{tpu_custom_call.1} parent=1 // pred_fallthru
      _
    // Predicated region
    $region22: #{tpu_custom_call.1} parent=1 // pred_check
      _
    $region23: #{tpu_custom_call.1} parent=1 // pred_check_branch
      %28 = sbr.rel (0) target = $region25
    $region24: #{tpu_custom_call.1} parent=1 // pred_region
      _
    $region25: #{tpu_custom_call.1} parent=1 // pred_fallthru
      _
    // Predicated region
    $region26: #{tpu_custom_call.1} parent=1 // pred_check
      _
    $region27: #{tpu_custom_call.1} parent=1 // pred_check_branch
      %30 = sbr.rel (0) target = $region29
    $region28: #{tpu_custom_call.1} parent=1 // pred_region
      _
    $region29: #{tpu_custom_call.1} parent=1 // pred_fallthru
      _
    // Predicated region
    $region30: #{tpu_custom_call.1} parent=1 // pred_check
      _
    $region31: #{tpu_custom_call.1} parent=1 // pred_check_branch
      %32 = sbr.rel (0) target = $region33
    $region32: #{tpu_custom_call.1} parent=1 // pred_region
      _
    $region33: #{tpu_custom_call.1} parent=1 // pred_fallthru
      _
    // Predicated region
    $region34: #{tpu_custom_call.1} parent=1 // pred_check
      _
    $region35: #{tpu_custom_call.1} parent=1 // pred_check_branch
      %34 = sbr.rel (0) target = $region37
    $region36: #{tpu_custom_call.1} parent=1 // pred_region
      _
    $region37: #{tpu_custom_call.1} parent=1 // pred_fallthru
      _
    // Predicated region
    $region38: #{tpu_custom_call.1} parent=1 // pred_check
      _
    $region39: #{tpu_custom_call.1} parent=1 // pred_check_branch
      %36 = sbr.rel (0) target = $region41
    $region40: #{tpu_custom_call.1} parent=1 // pred_region
      _
    $region41: #{tpu_custom_call.1} parent=1 // pred_fallthru
      _
    // Predicated region
    $region42: #{tpu_custom_call.1} parent=1 // pred_check
      _
    $region43: #{tpu_custom_call.1} parent=1 // pred_check_branch
      %38 = sbr.rel (0) target = $region45
    $region44: #{tpu_custom_call.1} parent=1 // pred_region
      _
    $region45: #{tpu_custom_call.1} parent=1 // pred_fallthru
      _
    %v39 = vld [vmem:[%s0] sm:$0xff]
    %v40 = vld [vmem:[%s0 + $0x8] sm:$0xff]
    %v41 = vld [vmem:[%s1] sm:$0xff]
    %v42 = vld [vmem:[%s1 + $0x8] sm:$0xff]
    %v43 = vld [vmem:[%s3] sm:$0x1]
    %45 = vset.pattern.permute.xlu0 0
    %46 = vperm.xlu0 %45, %v39
    %v47 = vpop.permute.xlu0 %46
    %50 = vset.pattern.permute.xlu0 0
    %51 = vperm.xlu0 %50, %v40
    %v52 = vpop.permute.xlu0 %51
    %v55 = vlaneseq
    %v56 = vshrl.u32 %v55, 7
    %v57 = vsub.s32 0, %v56
    %v58 = vrot.slane %v43, %v57
    %v60 = vmul.f32 %v47, %v58
    %v61 = vmul.f32 %v52, %v58
    %v62 = vld [vmem:[%s4] sm:$0x1]
    %v64 = vlaneseq
    %v65 = vshrl.u32 %v64, 7
    %v66 = vsub.s32 0, %v65
    %v67 = vrot.slane %v62, %v66
    %v69 = vadd.f32 %v60, %v67
    %v70 = vadd.f32 %v61, %v67
    %v71 = vtanh.pop %v69
    %v72 = vtanh.pop %v70
    %v73 = vld [vmem:[%s5] sm:$0xff]
    %v74 = vld [vmem:[%s5 + $0x8] sm:$0xff]
    %v75 = vld [vmem:[%s5 + $0x10] sm:$0xff]
    %v76 = vld [vmem:[%s5 + $0x18] sm:$0xff]
    %v77 = vld [vmem:[%s5 + $0x20] sm:$0xff]
    %v78 = vld [vmem:[%s5 + $0x28] sm:$0xff]
    %v79 = vld [vmem:[%s5 + $0x30] sm:$0xff]
    %v80 = vld [vmem:[%s5 + $0x38] sm:$0xff]
    %v81 = vld [vmem:[%s6] sm:$0x1]
    %v83 = vlaneseq
    %v84 = vshrl.u32 %v83, 7
    %v85 = vsub.s32 0, %v84
    %v86 = vrot.slane %v81, %v85
    %vm88 = vcmask 523264
    %v90 = vsel %vm88, %v71, 0
    %v93 = vsel %vm88, %v72, 0
    %95 = vmatprep.subr.mxu0 0.0
    %96 = vmatpush1.msra.mxu0 0.0
    %97 = vmatprep.subr.mxu0 0.0
    %98 = vmatpush1.msra.mxu0 0.0
    %99 = vmatprep.subr.mxu0 0.0
    %100 = vmatpush1.msra.mxu0 0.0
    %101 = vmatprep.subr.mxu0 0.0
    %102 = vmatpush1.msra.mxu0 0.0
    %103 = vmatprep.subr.mxu0 0.0
    %104 = vmatpush1.msra.mxu0 0.0
    %105 = vmatprep.subr.mxu0 0.0
    %106 = vmatpush1.msra.mxu0 0.0
    %107 = vmatprep.subr.mxu0 0.0
    %108 = vmatpush1.msra.mxu0 0.0
    %109 = vmatprep.subr.mxu0 0.0
    %110 = vmatpush1.msra.mxu0 0.0
    %111 = vmatprep.subr.mxu0 0.0
    %112 = vmatpush1.msra.mxu0 %v80
    %113 = vmatprep.subr.mxu0 0.0
    %114 = vmatpush1.msra.mxu0 %v79
    %115 = vmatprep.subr.mxu0 0.0
    %116 = vmatpush1.msra.mxu0 %v78
    %117 = vmatprep.subr.mxu0 0.0
    %118 = vmatpush1.msra.mxu0 %v77
    %119 = vmatprep.subr.mxu0 0.0
    %120 = vmatpush1.msra.mxu0 %v76
    %121 = vmatprep.subr.mxu0 0.0
    %122 = vmatpush1.msra.mxu0 %v75
    %123 = vmatprep.subr.mxu0 0.0
    %124 = vmatpush1.msra.mxu0 %v74
    %125 = vmatprep.subr.mxu0 0.0
    %126 = vmatpush1.msra.mxu0 %v73
    %127 = vmatprep.subr.mxu0 0.0
    %128 = vmatpush2.msra.mxu0 0.0
    %129 = vmatprep.subr.mxu0 0.0
    %130 = vmatpush2.msra.mxu0 0.0
    %131 = vmatprep.subr.mxu0 0.0
    %132 = vmatpush2.msra.mxu0 0.0
    %133 = vmatprep.subr.mxu0 0.0
    %134 = vmatpush2.msra.mxu0 0.0
    %135 = vmatprep.subr.mxu0 0.0
    %136 = vmatpush2.msra.mxu0 0.0
    %137 = vmatprep.subr.mxu0 0.0
    %138 = vmatpush2.msra.mxu0 0.0
    %139 = vmatprep.subr.mxu0 0.0
    %140 = vmatpush2.msra.mxu0 0.0
    %141 = vmatprep.subr.mxu0 0.0
    %142 = vmatpush2.msra.mxu0 0.0
    %143 = vmatprep.subr.mxu0 0.0
    %144 = vmatpush2.msra.mxu0 0.0
    %145 = vmatprep.subr.mxu0 0.0
    %146 = vmatpush2.msra.mxu0 0.0
    %147 = vmatprep.subr.mxu0 0.0
    %148 = vmatpush2.msra.mxu0 0.0
    %149 = vmatprep.subr.mxu0 0.0
    %150 = vmatpush2.msra.mxu0 0.0
    %151 = vmatprep.subr.mxu0 0.0
    %152 = vmatpush2.msra.mxu0 0.0
    %153 = vmatprep.subr.mxu0 0.0
    %154 = vmatpush2.msra.mxu0 0.0
    %155 = vmatprep.subr.mxu0 0.0
    %156 = vmatpush2.msra.mxu0 0.0
    %157 = vmatprep.subr.mxu0 0.0
    %158 = vmatpush2.msra.mxu0 0.0
    %159 = vmatprep.mubr.f32.mxu0 0.0
    %160 = vmatmul.mubr.f32.gmra.mxu0 %v90
    %v161 = vpop.f32.mrf.mxu0
    %v162 = vadd.f32 %v86, %v161
    %v163 = vpop.f32.mrf.mxu0
    %164 = vmatprep.mubr.f32.mxu0 0.0
    %165 = vmatmul.mubr.f32.gmra.mxu0 %v93
    %v166 = vpop.f32.mrf.mxu0
    %v167 = vadd.f32 %v86, %v166
    %v168 = vpop.f32.mrf.mxu0
    %169 = vdwg.mxu0
    %v170 = vld [vmem:[%s7] sm:$0x1]
    %172 = vset.pattern.permute.xlu0 0
    %173 = vperm.xlu0 %172, %v41
    %v174 = vpop.permute.xlu0 %173
    %177 = vset.pattern.permute.xlu0 0
    %178 = vperm.xlu0 %177, %v42
    %v179 = vpop.permute.xlu0 %178
    %v182 = vlaneseq
    %v183 = vshrl.u32 %v182, 7
    %v184 = vsub.s32 0, %v183
    %v185 = vrot.slane %v170, %v184
    %v187 = vmul.f32 %v174, %v185
    %v188 = vmul.f32 %v179, %v185
    %v189 = vld [vmem:[%s8] sm:$0x1]
    %v191 = vlaneseq
    %v192 = vshrl.u32 %v191, 7
    %v193 = vsub.s32 0, %v192
    %v194 = vrot.slane %v189, %v193
    %v196 = vadd.f32 %v187, %v194
    %v197 = vadd.f32 %v188, %v194
    %v198 = vtanh.pop %v196
    %v199 = vtanh.pop %v197
    %v200 = vld [vmem:[%s9] sm:$0xff]
    %v201 = vld [vmem:[%s9 + $0x8] sm:$0xff]
    %v202 = vld [vmem:[%s9 + $0x10] sm:$0xff]
    %v203 = vld [vmem:[%s9 + $0x18] sm:$0xff]
    %v204 = vld [vmem:[%s9 + $0x20] sm:$0xff]
    %v205 = vld [vmem:[%s9 + $0x28] sm:$0xff]
    %v206 = vld [vmem:[%s9 + $0x30] sm:$0xff]
    %v207 = vld [vmem:[%s9 + $0x38] sm:$0xff]
    %v208 = vld [vmem:[%s10] sm:$0x1]
    %v210 = vlaneseq
    %v211 = vshrl.u32 %v210, 7
    %v212 = vsub.s32 0, %v211
    %v213 = vrot.slane %v208, %v212
    %v216 = vsel %vm88, %v198, 0
    %v219 = vsel %vm88, %v199, 0
    %221 = vmatprep.subr.mxu0 0.0
    %222 = vmatpush1.msra.mxu0 0.0
    %223 = vmatprep.subr.mxu0 0.0
    %224 = vmatpush1.msra.mxu0 0.0
    %225 = vmatprep.subr.mxu0 0.0
    %226 = vmatpush1.msra.mxu0 0.0
    %227 = vmatprep.subr.mxu0 0.0
    %228 = vmatpush1.msra.mxu0 0.0
    %229 = vmatprep.subr.mxu0 0.0
    %230 = vmatpush1.msra.mxu0 0.0
    %231 = vmatprep.subr.mxu0 0.0
    %232 = vmatpush1.msra.mxu0 0.0
    %233 = vmatprep.subr.mxu0 0.0
    %234 = vmatpush1.msra.mxu0 0.0
    %235 = vmatprep.subr.mxu0 0.0
    %236 = vmatpush1.msra.mxu0 0.0
    %237 = vmatprep.subr.mxu0 0.0
    %238 = vmatpush1.msra.mxu0 %v207
    %239 = vmatprep.subr.mxu0 0.0
    %240 = vmatpush1.msra.mxu0 %v206
    %241 = vmatprep.subr.mxu0 0.0
    %242 = vmatpush1.msra.mxu0 %v205
    %243 = vmatprep.subr.mxu0 0.0
    %244 = vmatpush1.msra.mxu0 %v204
    %245 = vmatprep.subr.mxu0 0.0
    %246 = vmatpush1.msra.mxu0 %v203
    %247 = vmatprep.subr.mxu0 0.0
    %248 = vmatpush1.msra.mxu0 %v202
    %249 = vmatprep.subr.mxu0 0.0
    %250 = vmatpush1.msra.mxu0 %v201
    %251 = vmatprep.subr.mxu0 0.0
    %252 = vmatpush1.msra.mxu0 %v200
    %253 = vmatprep.subr.mxu0 0.0
    %254 = vmatpush2.msra.mxu0 0.0
    %255 = vmatprep.subr.mxu0 0.0
    %256 = vmatpush2.msra.mxu0 0.0
    %257 = vmatprep.subr.mxu0 0.0
    %258 = vmatpush2.msra.mxu0 0.0
    %259 = vmatprep.subr.mxu0 0.0
    %260 = vmatpush2.msra.mxu0 0.0
    %261 = vmatprep.subr.mxu0 0.0
    %262 = vmatpush2.msra.mxu0 0.0
    %263 = vmatprep.subr.mxu0 0.0
    %264 = vmatpush2.msra.mxu0 0.0
    %265 = vmatprep.subr.mxu0 0.0
    %266 = vmatpush2.msra.mxu0 0.0
    %267 = vmatprep.subr.mxu0 0.0
    %268 = vmatpush2.msra.mxu0 0.0
    %269 = vmatprep.subr.mxu0 0.0
    %270 = vmatpush2.msra.mxu0 0.0
    %271 = vmatprep.subr.mxu0 0.0
    %272 = vmatpush2.msra.mxu0 0.0
    %273 = vmatprep.subr.mxu0 0.0
    %274 = vmatpush2.msra.mxu0 0.0
    %275 = vmatprep.subr.mxu0 0.0
    %276 = vmatpush2.msra.mxu0 0.0
    %277 = vmatprep.subr.mxu0 0.0
    %278 = vmatpush2.msra.mxu0 0.0
    %279 = vmatprep.subr.mxu0 0.0
    %280 = vmatpush2.msra.mxu0 0.0
    %281 = vmatprep.subr.mxu0 0.0
    %282 = vmatpush2.msra.mxu0 0.0
    %283 = vmatprep.subr.mxu0 0.0
    %284 = vmatpush2.msra.mxu0 0.0
    %285 = vmatprep.mubr.f32.mxu0 0.0
    %286 = vmatmul.mubr.f32.gmra.mxu0 %v216
    %v287 = vpop.f32.mrf.mxu0
    %v288 = vadd.f32 %v213, %v287
    %v289 = vpop.f32.mrf.mxu0
    %290 = vmatprep.mubr.f32.mxu0 0.0
    %291 = vmatmul.mubr.f32.gmra.mxu0 %v219
    %v292 = vpop.f32.mrf.mxu0
    %v293 = vadd.f32 %v213, %v292
    %v294 = vpop.f32.mrf.mxu0
    %295 = vdwg.mxu0
    %v296 = vadd.f32 %v162, %v288
    %v297 = vadd.f32 %v167, %v293
    %v298 = vld [vmem:[%s2] sm:$0xff]
    %v299 = vld [vmem:[%s2 + $0x8] sm:$0xff]
    %v300 = vadd.f32 %v296, %v298
    %v301 = vadd.f32 %v297, %v299
    %vm302 = vcmask 261120
    %303 = vst.msk [vmem:[#allocation2] sm:$0xff] %vm302, %v300
    %304 = vst.msk [vmem:[#allocation2 + $0x8] sm:$0xff] %vm302, %v301
    // Predicated region
    $region46: #{tpu_custom_call.1} parent=1 // pred_check
      _
    $region47: #{tpu_custom_call.1} parent=1 // pred_check_branch
      %306 = sbr.rel (0) target = $region49
    $region48: #{tpu_custom_call.1} parent=1 // pred_region
      %s308 = ssub.s32 256, 256
      %309 = vsyncadd [#allocation3], %s308
      %s310 = sshll.u32 [#allocation2], 4
      %s311 = int_to_ptr.vmem [resolvable:$true] %s310
      %316 = dma.vmem_to_hbm [thread:$0]  %s311, 256, %s11, [#allocation3], 128, 128, 8
    $region49: #{tpu_custom_call.1} parent=1 // pred_fallthru
      _
    // Predicated region
    $region50: #{tpu_custom_call.1} parent=1 // pred_check
      _
    $region51: #{tpu_custom_call.1} parent=1 // pred_check_branch
      %318 = sbr.rel (0) target = $region53
    $region52: #{tpu_custom_call.1} parent=1 // pred_region
      %319 = dma.done [#allocation3], 256
    $region53: #{tpu_custom_call.1} parent=1 // pred_fallthru
      _
    %320 = vsyncpa [#allocation3], 1

</llo_original>
